<compile_context>
chip_gen: v7x
topology: tpu7x:2x2x1
jax: 0.10.0
libtpu: 0.0.40
codegen_flags: <defaults>
</compile_context>

<pallas_src>
import functools

import jax
import jax.numpy as jnp
from jax import lax
from jax.experimental import pallas as pl
from jax.experimental.pallas import tpu as pltpu


def qcnet_kernel(x_ref, w1_ref, b1_ref, w2_ref, b2_ref, w3_ref, b3_ref,
                 w4_ref, b4_ref, o_ref):
    """Fused forward pass.

    x_ref:  (blk, d_in)   caller dtype (f32 or bf16), batch-major as given
    w_k:    (out_k, in_k) bf16 (PyTorch Linear layout)
    b_k:    (out_k, 1)    f32
    o_ref:  (d_out, blk)  out_dtype, feature-major (lane-dense stores)
    """
    # bf16 operands -> single-pass MXU matmuls; f32 accumulation throughout.
    x = x_ref[...].astype(jnp.bfloat16)                                # (blk, d_in)

    # Layer 1: contract d_in (last axis of BOTH operands) -> (16, blk),
    # feature-major, with no wrapper or in-kernel relayout of x.
    h = lax.dot_general(w1_ref[...], x, (((1,), (1,)), ((), ())),
                        preferred_element_type=jnp.float32) + b1_ref[...]
    h = jnp.maximum(h, 0.0)                                            # (16, blk) f32

    h = jnp.dot(w2_ref[...], h.astype(jnp.bfloat16),
                preferred_element_type=jnp.float32) + b2_ref[...]
    h = jnp.maximum(h, 0.0)                                            # (32, blk)

    h = jnp.dot(w3_ref[...], h.astype(jnp.bfloat16),
                preferred_element_type=jnp.float32) + b3_ref[...]
    h = jnp.maximum(h, 0.0)                                            # (16, blk)

    logits = jnp.dot(w4_ref[...], h.astype(jnp.bfloat16),
                     preferred_element_type=jnp.float32) + b4_ref[...]  # (d_out, blk)

    # Numerically-stable softmax over the class axis (sublanes).  Exact divide
    # so each column sums to 1, matching torch.softmax(., dim=1).
    m = jnp.max(logits, axis=0, keepdims=True)
    e = jnp.exp(logits - m)
    s = jnp.sum(e, axis=0, keepdims=True)
    o_ref[...] = (e / s).astype(o_ref.dtype)


def _round_up(n, m):
    return ((n + m - 1) // m) * m


def _choose_block(B, block_b):
    """Pick the batch tile.

    Big tiles amortize per-grid-step overhead; when B fits a single tile but is
    >= 256 we still split into two lane-aligned blocks so the 'parallel' batch
    axis can be sharded across both v7x TensorCores (no effect on v5e/v6e).
    """
    if B > block_b:
        return block_b
    if B >= 256:
        return min(B, _round_up(pl.cdiv(B, 2), 128))
    return B


@functools.partial(jax.jit, static_argnames=("block_b", "out_dtype", "transpose_out"))
def qcnet_forward(x, params, block_b=4096, out_dtype=jnp.float32,
                  transpose_out=False):
    """Run the fused QcNet kernel.

    x:      (B, d_in), f32 or bf16, standard batch-major layout (no wrapper
            transpose / relayout is performed on it).
    params: (w1, b1, ..., w4, b4) with w_k (out, in), b_k (out, 1), f32.
    Returns feature-major (d_out, B) probabilities by default (fast, lane-dense
    path); pass transpose_out=True for PyTorch's (B, d_out) layout.
    """
    assert block_b % 128 == 0, "block_b must be a multiple of 128 (256 preferred on v6e/v7x)"
    w1, b1, w2, b2, w3, b3, w4, b4 = params
    B, d_in = x.shape
    d_out = w4.shape[0]

    # Cast weights to bf16 once (tiny); biases stay f32 for the f32 epilogue.
    w1 = w1.astype(jnp.bfloat16)
    w2 = w2.astype(jnp.bfloat16)
    w3 = w3.astype(jnp.bfloat16)
    w4 = w4.astype(jnp.bfloat16)

    blk = _choose_block(B, block_b)
    grid = (pl.cdiv(B, blk),)

    # Conservative per-step VMEM estimate: double-buffered x tile (lane-padded
    # to 128) + double-buffered out tile (sublane-padded to 8) + f32
    # feature-major intermediates.  Only set an explicit limit when the default
    # scoped-VMEM budget (16 MiB on v5e) would be at risk.
    x_it = jnp.dtype(x.dtype).itemsize
    o_it = jnp.dtype(out_dtype).itemsize
    est_vmem = blk * (128 * x_it * 2 + 8 * o_it * 2 + (16 + 32 + 16) * 4) + (64 << 10)
    vmem_limit = None
    if est_vmem > (12 << 20):
        vmem_limit = int(min(2 * est_vmem, 64 << 20))

    def resident(arr):
        # Whole-array block, constant block index: stays resident in VMEM.
        return pl.BlockSpec(arr.shape, lambda i: (0, 0))

    out_fm = pl.pallas_call(
        qcnet_kernel,
        out_shape=jax.ShapeDtypeStruct((d_out, B), out_dtype),
        grid_spec=pltpu.PrefetchScalarGridSpec(
            num_scalar_prefetch=0,
            grid=grid,
            in_specs=[
                pl.BlockSpec((blk, d_in), lambda i: (i, 0)),   # streamed x tile
                resident(w1), resident(b1),
                resident(w2), resident(b2),
                resident(w3), resident(b3),
                resident(w4), resident(b4),
            ],
            out_specs=pl.BlockSpec((d_out, blk), lambda i: (0, i)),
        ),
        compiler_params=pltpu.CompilerParams(
            dimension_semantics=("parallel",),   # batch axis shards across TCs (v7x)
            vmem_limit_bytes=vmem_limit),
    )(x, w1, b1, w2, b2, w3, b3, w4, b4)

    if transpose_out:
        return out_fm.T   # PyTorch layout (B, d_out); tiny (4 x B) relayout
    return out_fm         # fast path: feature-major (d_out, B)


def init_params(key, d_in, d_out):
    """nn.Linear-style init (U[-1/sqrt(fan_in), 1/sqrt(fan_in)]).

    Weights stored as (out_features, in_features) (PyTorch layout), biases as
    (out_features, 1) columns so they broadcast over the lane (batch) axis.
    """
    dims = [d_in, 16, 32, 16, d_out]
    params = []
    for li in range(4):
        fan_in, fan_out = dims[li], dims[li + 1]
        key, kw, kb = jax.random.split(key, 3)
        bound = 1.0 / jnp.sqrt(float(fan_in))
        w = jax.random.uniform(kw, (fan_out, fan_in), jnp.float32, -bound, bound)
        b = jax.random.uniform(kb, (fan_out, 1), jnp.float32, -bound, bound)
        params += [w, b]
    return tuple(params)


def qcnet_reference(x, params, emulate_bf16=False):
    """Pure-JAX reference, feature-major (d_out, B) probabilities.

    emulate_bf16=True rounds x / weights / per-layer activations to bf16
    exactly where the kernel does, so it matches the bf16-MXU path tightly.
    """
    def _r(a):
        return a.astype(jnp.bfloat16).astype(jnp.float32) if emulate_bf16 else a

    w1, b1, w2, b2, w3, b3, w4, b4 = params
    h = x.T  # (d_in, B)
    for w, b in ((w1, b1), (w2, b2), (w3, b3)):
        h = jnp.maximum(_r(w) @ _r(h) + b, 0.0)
    logits = _r(w4) @ _r(h) + b4
    return jax.nn.softmax(logits, axis=0)


if __name__ == "__main__":
    key = jax.random.PRNGKey(0)
    k_x, k_p = jax.random.split(key)

    # C = {'in': 8, 'out': 4}; batch = 16 (small demo shapes)
    B, D_IN, D_OUT = 16, 8, 4
    x = jax.random.normal(k_x, (B, D_IN), jnp.float32)
    params = init_params(k_p, D_IN, D_OUT)

    ref_f32 = qcnet_reference(x, params, emulate_bf16=False)   # (d_out, B)
    ref_bf16 = qcnet_reference(x, params, emulate_bf16=True)   # (d_out, B)

    # Fast path: feature-major (d_out, B), f32 probabilities.
    out_fm = jax.block_until_ready(qcnet_forward(x, params))
    assert out_fm.shape == (D_OUT, B)
    assert jnp.allclose(out_fm, ref_bf16, atol=2e-3, rtol=2e-3), "bf16-matmul path mismatch"
    assert jnp.allclose(out_fm, ref_f32, atol=5e-2), "too far from full-f32 reference"
    assert jnp.allclose(jnp.sum(out_fm, axis=0), 1.0, atol=1e-3), "columns must sum to 1"

    # Torch-compatible layout (B, d_out) == torch.softmax(fc4(...), dim=1).
    out_nc = jax.block_until_ready(qcnet_forward(x, params, transpose_out=True))
    assert out_nc.shape == (B, D_OUT)
    assert jnp.allclose(out_nc, ref_bf16.T, atol=2e-3, rtol=2e-3), "torch-layout mismatch"
    assert jnp.allclose(jnp.sum(out_nc, axis=1), 1.0, atol=1e-3), "rows must sum to 1"

    # Optional bf16 probability output (halves store-side HBM traffic).
    out_bf = jax.block_until_ready(qcnet_forward(x, params, out_dtype=jnp.bfloat16))
    assert out_bf.dtype == jnp.bfloat16
    assert jnp.allclose(out_bf.astype(jnp.float32), ref_f32, atol=6e-2), "bf16-output mismatch"

    print("KERNEL_OK")
</pallas_src>

<mosaic_0001>
module attributes {stable_mosaic.version = 11 : i64} {
  func.func @qcnet_kernel(%arg0: i32, %arg1: memref<16x8xf32, #tpu.memory_space<vmem>>, %arg2: memref<16x8xbf16, #tpu.memory_space<vmem>>, %arg3: memref<16x1xf32, #tpu.memory_space<vmem>>, %arg4: memref<32x16xbf16, #tpu.memory_space<vmem>>, %arg5: memref<32x1xf32, #tpu.memory_space<vmem>>, %arg6: memref<16x32xbf16, #tpu.memory_space<vmem>>, %arg7: memref<16x1xf32, #tpu.memory_space<vmem>>, %arg8: memref<4x16xbf16, #tpu.memory_space<vmem>>, %arg9: memref<4x1xf32, #tpu.memory_space<vmem>>, %arg10: memref<4x16xf32, #tpu.memory_space<vmem>>) attributes {dimension_semantics = [#tpu.dimension_semantics<parallel>], iteration_bounds = array<i64: 1>, scalar_prefetch = 0 : i64, scratch_operands = 0 : i64, tpu.core_type = #tpu.core_type<tc>, window_params = [{transform_indices = @transform_0, window_bounds = array<i64: 16, 8>}, {pipeline_mode = #tpu.pipeline_mode<synchronous>, transform_indices = @transform_1, window_bounds = array<i64: 16, 8>}, {pipeline_mode = #tpu.pipeline_mode<synchronous>, transform_indices = @transform_2, window_bounds = array<i64: 16, 1>}, {pipeline_mode = #tpu.pipeline_mode<synchronous>, transform_indices = @transform_3, window_bounds = array<i64: 32, 16>}, {pipeline_mode = #tpu.pipeline_mode<synchronous>, transform_indices = @transform_4, window_bounds = array<i64: 32, 1>}, {pipeline_mode = #tpu.pipeline_mode<synchronous>, transform_indices = @transform_5, window_bounds = array<i64: 16, 32>}, {pipeline_mode = #tpu.pipeline_mode<synchronous>, transform_indices = @transform_6, window_bounds = array<i64: 16, 1>}, {pipeline_mode = #tpu.pipeline_mode<synchronous>, transform_indices = @transform_7, window_bounds = array<i64: 4, 16>}, {pipeline_mode = #tpu.pipeline_mode<synchronous>, transform_indices = @transform_8, window_bounds = array<i64: 4, 1>}, {transform_indices = @transform_9, window_bounds = array<i64: 4, 16>}]} {
    %c0 = arith.constant 0 : index
    %c0_0 = arith.constant 0 : index
    %0 = vector.load %arg1[%c0, %c0_0] : memref<16x8xf32, #tpu.memory_space<vmem>>, vector<16x8xf32>
    %1 = arith.truncf %0 : vector<16x8xf32> to vector<16x8xbf16>
    %c0_1 = arith.constant 0 : index
    %c0_2 = arith.constant 0 : index
    %2 = vector.load %arg2[%c0_1, %c0_2] : memref<16x8xbf16, #tpu.memory_space<vmem>>, vector<16x8xbf16>
    %cst = arith.constant dense<0.000000e+00> : vector<16x16xf32>
    %3 = tpu.matmul %2, %1, %cst {dimension_numbers = #tpu.dot_dimension_numbers<[1], [1], [0], [0], [0, 0, 1, 0], [], []>} : vector<16x8xbf16>, vector<16x8xbf16>, vector<16x16xf32> -> vector<16x16xf32>
    %c0_3 = arith.constant 0 : index
    %c0_4 = arith.constant 0 : index
    %4 = vector.load %arg3[%c0_3, %c0_4] : memref<16x1xf32, #tpu.memory_space<vmem>>, vector<16x1xf32>
    %5 = vector.broadcast %4 : vector<16x1xf32> to vector<16x16xf32>
    %6 = arith.addf %3, %5 : vector<16x16xf32>
    %cst_5 = arith.constant 0.000000e+00 : f32
    %7 = vector.broadcast %cst_5 : f32 to vector<16x16xf32>
    %8 = arith.maximumf %6, %7 : vector<16x16xf32>
    %c0_6 = arith.constant 0 : index
    %c0_7 = arith.constant 0 : index
    %9 = vector.load %arg4[%c0_6, %c0_7] : memref<32x16xbf16, #tpu.memory_space<vmem>>, vector<32x16xbf16>
    %10 = arith.truncf %8 : vector<16x16xf32> to vector<16x16xbf16>
    %cst_8 = arith.constant dense<0.000000e+00> : vector<32x16xf32>
    %11 = tpu.matmul %9, %10, %cst_8 {dimension_numbers = #tpu.dot_dimension_numbers<[1], [0], [0], [1], [0, 0, 1, 1], [], []>} : vector<32x16xbf16>, vector<16x16xbf16>, vector<32x16xf32> -> vector<32x16xf32>
    %c0_9 = arith.constant 0 : index
    %c0_10 = arith.constant 0 : index
    %12 = vector.load %arg5[%c0_9, %c0_10] : memref<32x1xf32, #tpu.memory_space<vmem>>, vector<32x1xf32>
    %13 = vector.broadcast %12 : vector<32x1xf32> to vector<32x16xf32>
    %14 = arith.addf %11, %13 : vector<32x16xf32>
    %cst_11 = arith.constant 0.000000e+00 : f32
    %15 = vector.broadcast %cst_11 : f32 to vector<32x16xf32>
    %16 = arith.maximumf %14, %15 : vector<32x16xf32>
    %c0_12 = arith.constant 0 : index
    %c0_13 = arith.constant 0 : index
    %17 = vector.load %arg6[%c0_12, %c0_13] : memref<16x32xbf16, #tpu.memory_space<vmem>>, vector<16x32xbf16>
    %18 = arith.truncf %16 : vector<32x16xf32> to vector<32x16xbf16>
    %cst_14 = arith.constant dense<0.000000e+00> : vector<16x16xf32>
    %19 = tpu.matmul %17, %18, %cst_14 {dimension_numbers = #tpu.dot_dimension_numbers<[1], [0], [0], [1], [0, 0, 1, 1], [], []>} : vector<16x32xbf16>, vector<32x16xbf16>, vector<16x16xf32> -> vector<16x16xf32>
    %c0_15 = arith.constant 0 : index
    %c0_16 = arith.constant 0 : index
    %20 = vector.load %arg7[%c0_15, %c0_16] : memref<16x1xf32, #tpu.memory_space<vmem>>, vector<16x1xf32>
    %21 = vector.broadcast %20 : vector<16x1xf32> to vector<16x16xf32>
    %22 = arith.addf %19, %21 : vector<16x16xf32>
    %cst_17 = arith.constant 0.000000e+00 : f32
    %23 = vector.broadcast %cst_17 : f32 to vector<16x16xf32>
    %24 = arith.maximumf %22, %23 : vector<16x16xf32>
    %c0_18 = arith.constant 0 : index
    %c0_19 = arith.constant 0 : index
    %25 = vector.load %arg8[%c0_18, %c0_19] : memref<4x16xbf16, #tpu.memory_space<vmem>>, vector<4x16xbf16>
    %26 = arith.truncf %24 : vector<16x16xf32> to vector<16x16xbf16>
    %cst_20 = arith.constant dense<0.000000e+00> : vector<4x16xf32>
    %27 = tpu.matmul %25, %26, %cst_20 {dimension_numbers = #tpu.dot_dimension_numbers<[1], [0], [0], [1], [0, 0, 1, 1], [], []>} : vector<4x16xbf16>, vector<16x16xbf16>, vector<4x16xf32> -> vector<4x16xf32>
    %c0_21 = arith.constant 0 : index
    %c0_22 = arith.constant 0 : index
    %28 = vector.load %arg9[%c0_21, %c0_22] : memref<4x1xf32, #tpu.memory_space<vmem>>, vector<4x1xf32>
    %29 = vector.broadcast %28 : vector<4x1xf32> to vector<4x16xf32>
    %30 = arith.addf %27, %29 : vector<4x16xf32>
    %cst_23 = arith.constant dense<0xFF800000> : vector<16xf32>
    %31 = vector.multi_reduction <maximumf>, %30, %cst_23 [0] : vector<4x16xf32> to vector<16xf32>
    %32 = vector.shape_cast %31 : vector<16xf32> to vector<1x16xf32>
    %33 = vector.broadcast %32 : vector<1x16xf32> to vector<4x16xf32>
    %34 = arith.subf %30, %33 : vector<4x16xf32>
    %35 = math.exp %34 : vector<4x16xf32>
    %cst_24 = arith.constant dense<0.000000e+00> : vector<16xf32>
    %36 = vector.multi_reduction <add>, %35, %cst_24 [0] : vector<4x16xf32> to vector<16xf32>
    %37 = vector.shape_cast %36 : vector<16xf32> to vector<1x16xf32>
    %38 = vector.broadcast %37 : vector<1x16xf32> to vector<4x16xf32>
    %39 = arith.divf %35, %38 : vector<4x16xf32>
    %c0_25 = arith.constant 0 : index
    %c0_26 = arith.constant 0 : index
    %40 = vector.load %arg10[%c0_25, %c0_26] : memref<4x16xf32, #tpu.memory_space<vmem>>, vector<4x16xf32>
    tpu.vector_store %arg10[%c0_25, %c0_26], %39 {strides = array<i32>} : memref<4x16xf32, #tpu.memory_space<vmem>>, vector<4x16xf32>,
    return
  }
  func.func @transform_0(%arg0: i32) -> (i32, i32) {
    %c0_i32 = arith.constant 0 : i32
    %c0_i32_0 = arith.constant 0 : i32
    return %arg0, %c0_i32 : i32, i32
  }
  func.func @transform_1(%arg0: i32) -> (i32, i32) {
    %c0_i32 = arith.constant 0 : i32
    %c0_i32_0 = arith.constant 0 : i32
    %c0_i32_1 = arith.constant 0 : i32
    return %c0_i32, %c0_i32_0 : i32, i32
  }
  func.func @transform_2(%arg0: i32) -> (i32, i32) {
    %c0_i32 = arith.constant 0 : i32
    %c0_i32_0 = arith.constant 0 : i32
    %c0_i32_1 = arith.constant 0 : i32
    return %c0_i32, %c0_i32_0 : i32, i32
  }
  func.func @transform_3(%arg0: i32) -> (i32, i32) {
    %c0_i32 = arith.constant 0 : i32
    %c0_i32_0 = arith.constant 0 : i32
    %c0_i32_1 = arith.constant 0 : i32
    return %c0_i32, %c0_i32_0 : i32, i32
  }
  func.func @transform_4(%arg0: i32) -> (i32, i32) {
    %c0_i32 = arith.constant 0 : i32
    %c0_i32_0 = arith.constant 0 : i32
    %c0_i32_1 = arith.constant 0 : i32
    return %c0_i32, %c0_i32_0 : i32, i32
  }
  func.func @transform_5(%arg0: i32) -> (i32, i32) {
    %c0_i32 = arith.constant 0 : i32
    %c0_i32_0 = arith.constant 0 : i32
    %c0_i32_1 = arith.constant 0 : i32
    return %c0_i32, %c0_i32_0 : i32, i32
  }
  func.func @transform_6(%arg0: i32) -> (i32, i32) {
    %c0_i32 = arith.constant 0 : i32
    %c0_i32_0 = arith.constant 0 : i32
    %c0_i32_1 = arith.constant 0 : i32
    return %c0_i32, %c0_i32_0 : i32, i32
  }
  func.func @transform_7(%arg0: i32) -> (i32, i32) {
    %c0_i32 = arith.constant 0 : i32
    %c0_i32_0 = arith.constant 0 : i32
    %c0_i32_1 = arith.constant 0 : i32
    return %c0_i32, %c0_i32_0 : i32, i32
  }
  func.func @transform_8(%arg0: i32) -> (i32, i32) {
    %c0_i32 = arith.constant 0 : i32
    %c0_i32_0 = arith.constant 0 : i32
    %c0_i32_1 = arith.constant 0 : i32
    return %c0_i32, %c0_i32_0 : i32, i32
  }
  func.func @transform_9(%arg0: i32) -> (i32, i32) {
    %c0_i32 = arith.constant 0 : i32
    %c0_i32_0 = arith.constant 0 : i32
    return %c0_i32, %arg0 : i32, i32
  }
}

</mosaic_0001>

<llo_original>
// kernel: qcnet_forward.1
$region0: #{qcnet_forward.1}
  #allocation0 [shape = 'u32[]', space=smem, size = 0x4, offset = 0x4, fixed_abs, tag = 'smem constant byte address 0x4 - core index']
  #allocation1 [shape = 'u32[144,128]{1,0:T(1,128)}', space=vmem, size = 0x12000, scoped, tag = 'internal scratch']
  %s0 = inlined_call_operand.vmem [shape: f32[16,8], index: 0, kind: input, shape index: {}]
  %s1 = inlined_call_operand.vmem [shape: bf16[16,8], index: 1, kind: input, shape index: {}]
  %s2 = inlined_call_operand.vmem [shape: f32[16,1], index: 2, kind: input, shape index: {}]
  %s3 = inlined_call_operand.vmem [shape: bf16[32,16], index: 3, kind: input, shape index: {}]
  %s4 = inlined_call_operand.vmem [shape: f32[32,1], index: 4, kind: input, shape index: {}]
  %s5 = inlined_call_operand.vmem [shape: bf16[16,32], index: 5, kind: input, shape index: {}]
  %s6 = inlined_call_operand.vmem [shape: f32[16,1], index: 6, kind: input, shape index: {}]
  %s7 = inlined_call_operand.vmem [shape: bf16[4,16], index: 7, kind: input, shape index: {}]
  %s8 = inlined_call_operand.vmem [shape: f32[4,1], index: 8, kind: input, shape index: {}]
  %s9 = inlined_call_operand.hbm [shape: f32[4,16], index: 9, kind: output, shape index: {}]
  %s10 = sld [smem:[#allocation0]]
  $region46: #{qcnet_forward.1} parent=0
    _
  %s12 = ssub.s32 1, %s10
  %s13 = scalar_select 0, %s12, %s10
  $region1: #{qcnet_forward.1} parent=0
    #allocation2 [shape = 'u8[2048]{0}', space=vmem, size = 0x800, scoped, tag = 'output window, operand 0, single buffered']
    #allocation3 [shape = 's32[1]{0}', space=sflag, size = 0x4, scoped, tag = 'scoped memory for qcnet_forward.1']
    %14 = vsyncpa [#allocation3], 0
    // Predicated region
    $region2: #{qcnet_forward.1} parent=1 // pred_check
      _
    $region3: #{qcnet_forward.1} parent=1 // pred_check_branch
      %16 = sbr.rel (0) target = $region5
    $region4: #{qcnet_forward.1} parent=1 // pred_region
      _
    $region5: #{qcnet_forward.1} parent=1 // pred_fallthru
      _
    // Predicated region
    $region6: #{qcnet_forward.1} parent=1 // pred_check
      _
    $region7: #{qcnet_forward.1} parent=1 // pred_check_branch
      %18 = sbr.rel (0) target = $region9
    $region8: #{qcnet_forward.1} parent=1 // pred_region
      _
    $region9: #{qcnet_forward.1} parent=1 // pred_fallthru
      _
    // Predicated region
    $region10: #{qcnet_forward.1} parent=1 // pred_check
      _
    $region11: #{qcnet_forward.1} parent=1 // pred_check_branch
      %20 = sbr.rel (0) target = $region13
    $region12: #{qcnet_forward.1} parent=1 // pred_region
      _
    $region13: #{qcnet_forward.1} parent=1 // pred_fallthru
      _
    // Predicated region
    $region14: #{qcnet_forward.1} parent=1 // pred_check
      _
    $region15: #{qcnet_forward.1} parent=1 // pred_check_branch
      %22 = sbr.rel (0) target = $region17
    $region16: #{qcnet_forward.1} parent=1 // pred_region
      _
    $region17: #{qcnet_forward.1} parent=1 // pred_fallthru
      _
    // Predicated region
    $region18: #{qcnet_forward.1} parent=1 // pred_check
      _
    $region19: #{qcnet_forward.1} parent=1 // pred_check_branch
      %24 = sbr.rel (0) target = $region21
    $region20: #{qcnet_forward.1} parent=1 // pred_region
      _
    $region21: #{qcnet_forward.1} parent=1 // pred_fallthru
      _
    // Predicated region
    $region22: #{qcnet_forward.1} parent=1 // pred_check
      _
    $region23: #{qcnet_forward.1} parent=1 // pred_check_branch
      %26 = sbr.rel (0) target = $region25
    $region24: #{qcnet_forward.1} parent=1 // pred_region
      _
    $region25: #{qcnet_forward.1} parent=1 // pred_fallthru
      _
    // Predicated region
    $region26: #{qcnet_forward.1} parent=1 // pred_check
      _
    $region27: #{qcnet_forward.1} parent=1 // pred_check_branch
      %28 = sbr.rel (0) target = $region29
    $region28: #{qcnet_forward.1} parent=1 // pred_region
      _
    $region29: #{qcnet_forward.1} parent=1 // pred_fallthru
      _
    // Predicated region
    $region30: #{qcnet_forward.1} parent=1 // pred_check
      _
    $region31: #{qcnet_forward.1} parent=1 // pred_check_branch
      %30 = sbr.rel (0) target = $region33
    $region32: #{qcnet_forward.1} parent=1 // pred_region
      _
    $region33: #{qcnet_forward.1} parent=1 // pred_fallthru
      _
    // Predicated region
    $region34: #{qcnet_forward.1} parent=1 // pred_check
      _
    $region35: #{qcnet_forward.1} parent=1 // pred_check_branch
      %32 = sbr.rel (0) target = $region37
    $region36: #{qcnet_forward.1} parent=1 // pred_region
      _
    $region37: #{qcnet_forward.1} parent=1 // pred_fallthru
      _
    %v34 = vld [vmem:[%s0] sm:$0xff]
    %v35 = vld [vmem:[%s0 + $0x8] sm:$0xff]
    %v36 = vpack.c.bf16 %v35, %v34
    %v37 = vld [vmem:[%s1] sm:$0xf]
    %v38 = vld [vmem:[%s1 + $0x4] sm:$0xf]
    %v39 = vld [vmem:[%s2] sm:$0xff]
    %v40 = vld [vmem:[%s2 + $0x8] sm:$0xff]
    %42 = vset.pattern.permute.xlu0 0
    %43 = vperm.xlu0 %42, %v39
    %v44 = vpop.permute.xlu0 %43
    %47 = vset.pattern.permute.xlu0 0
    %48 = vperm.xlu0 %47, %v40
    %v49 = vpop.permute.xlu0 %48
    %v53 = vunpack.c.l.b16 %v37
    %v54 = vunpack.c.l.b16 %v38
    %v55 = vpack.c.b16 %v54, %v53
    %vm56 = vcmask 64512
    %v58 = vsel %vm56, %v55, 0
    %v61 = vsel %vm56, %v36, 0
    %63 = vmatprep.subr.bf16.mxu0 0
    %64 = vmatpush1.bf16.xpose.msra.mxu0 %v61
    %65 = vmatprep.subr.bf16.mxu0 0
    %66 = vmatpush1.bf16.xpose.msra.mxu0 0
    %67 = vmatprep.subr.bf16.mxu0 0
    %68 = vmatpush1.bf16.xpose.msra.mxu0 0
    %69 = vmatprep.subr.bf16.mxu0 0
    %70 = vmatpush1.bf16.xpose.msra.mxu0 0
    %71 = vmatprep.subr.bf16.mxu0 0
    %72 = vmatpush1.bf16.xpose.msra.mxu0 0
    %73 = vmatprep.subr.bf16.mxu0 0
    %74 = vmatpush1.bf16.xpose.msra.mxu0 0
    %75 = vmatprep.subr.bf16.mxu0 0
    %76 = vmatpush1.bf16.xpose.msra.mxu0 0
    %77 = vmatprep.subr.bf16.mxu0 0
    %78 = vmatpush1.bf16.xpose.msra.mxu0 0
    %79 = vmatprep.subr.bf16.mxu0 0
    %80 = vmatpush1.bf16.xpose.msra.mxu0 0
    %81 = vmatprep.subr.bf16.mxu0 0
    %82 = vmatpush1.bf16.xpose.msra.mxu0 0
    %83 = vmatprep.subr.bf16.mxu0 0
    %84 = vmatpush1.bf16.xpose.msra.mxu0 0
    %85 = vmatprep.subr.bf16.mxu0 0
    %86 = vmatpush1.bf16.xpose.msra.mxu0 0
    %87 = vmatprep.subr.bf16.mxu0 0
    %88 = vmatpush1.bf16.xpose.msra.mxu0 0
    %89 = vmatprep.subr.bf16.mxu0 0
    %90 = vmatpush1.bf16.xpose.msra.mxu0 0
    %91 = vmatprep.subr.bf16.mxu0 0
    %92 = vmatpush1.bf16.xpose.msra.mxu0 0
    %93 = vmatprep.subr.bf16.mxu0 0
    %94 = vmatpush1.bf16.xpose.msra.mxu0 0
    %95 = vmatprep.mubr.bf16.mxu0 0
    %96 = vmatmul.mubr.bf16.gmra.mrb[0].mxu0 %v58
    %v97 = vpop.f32.mrb[0].mxu0
    %v98 = vadd.f32 %v44, %v97
    %v99 = vpop.f32.mrb[0].mxu0
    %v100 = vpop.f32.mrb[0].mxu0
    %v101 = vadd.f32 %v49, %v100
    %v102 = vpop.f32.mrb[0].mxu0
    %103 = vdwg.mxu0
    %v104 = vmax.f32 %v98, 0.0
    %v105 = vmax.f32 %v101, 0.0
    %v106 = vld [vmem:[%s3] sm:$0xf]
    %v107 = vld [vmem:[%s3 + $0x4] sm:$0xf]
    %v108 = vld [vmem:[%s3 + $0x8] sm:$0xf]
    %v109 = vld [vmem:[%s3 + $0xc] sm:$0xf]
    %v110 = vpack.c.bf16 %v105, %v104
    %v111 = vld [vmem:[%s4] sm:$0xff]
    %v112 = vld [vmem:[%s4 + $0x8] sm:$0xff]
    %v113 = vld [vmem:[%s4 + $0x10] sm:$0xff]
    %v114 = vld [vmem:[%s4 + $0x18] sm:$0xff]
    %116 = vset.pattern.permute.xlu0 0
    %117 = vperm.xlu0 %116, %v111
    %v118 = vpop.permute.xlu0 %117
    %121 = vset.pattern.permute.xlu0 0
    %122 = vperm.xlu0 %121, %v112
    %v123 = vpop.permute.xlu0 %122
    %126 = vset.pattern.permute.xlu0 0
    %127 = vperm.xlu0 %126, %v113
    %v128 = vpop.permute.xlu0 %127
    %131 = vset.pattern.permute.xlu0 0
    %132 = vperm.xlu0 %131, %v114
    %v133 = vpop.permute.xlu0 %132
    %v139 = vunpack.c.l.b16 %v106
    %v140 = vunpack.c.l.b16 %v107
    %v141 = vunpack.c.l.b16 %v108
    %v142 = vunpack.c.l.b16 %v109
    %v143 = vpack.c.b16 %v140, %v139
    %v144 = vpack.c.b16 %v142, %v141
    %vm145 = vcmask 130048
    %v147 = vsel %vm145, %v143, 0
    %v150 = vsel %vm145, %v144, 0
    %152 = vmatprep.subr.bf16.mxu0 0
    %153 = vmatpush1.bf16.msra.mxu0 %v110
    %154 = vmatprep.subr.bf16.mxu0 0
    %155 = vmatpush1.bf16.msra.mxu0 0
    %156 = vmatprep.subr.bf16.mxu0 0
    %157 = vmatpush1.bf16.msra.mxu0 0
    %158 = vmatprep.subr.bf16.mxu0 0
    %159 = vmatpush1.bf16.msra.mxu0 0
    %160 = vmatprep.subr.bf16.mxu0 0
    %161 = vmatpush1.bf16.msra.mxu0 0
    %162 = vmatprep.subr.bf16.mxu0 0
    %163 = vmatpush1.bf16.msra.mxu0 0
    %164 = vmatprep.subr.bf16.mxu0 0
    %165 = vmatpush1.bf16.msra.mxu0 0
    %166 = vmatprep.subr.bf16.mxu0 0
    %167 = vmatpush1.bf16.msra.mxu0 0
    %168 = vmatprep.subr.bf16.mxu0 0
    %169 = vmatpush1.bf16.msra.mxu0 0
    %170 = vmatprep.subr.bf16.mxu0 0
    %171 = vmatpush1.bf16.msra.mxu0 0
    %172 = vmatprep.subr.bf16.mxu0 0
    %173 = vmatpush1.bf16.msra.mxu0 0
    %174 = vmatprep.subr.bf16.mxu0 0
    %175 = vmatpush1.bf16.msra.mxu0 0
    %176 = vmatprep.subr.bf16.mxu0 0
    %177 = vmatpush1.bf16.msra.mxu0 0
    %178 = vmatprep.subr.bf16.mxu0 0
    %179 = vmatpush1.bf16.msra.mxu0 0
    %180 = vmatprep.subr.bf16.mxu0 0
    %181 = vmatpush1.bf16.msra.mxu0 0
    %182 = vmatprep.subr.bf16.mxu0 0
    %183 = vmatpush1.bf16.msra.mxu0 0
    %184 = vmatprep.mubr.bf16.mxu0 0
    %185 = vmatmul.mubr.bf16.gmra.mrb[0].mxu0 %v147
    %v186 = vpop.f32.mrb[0].mxu0
    %v187 = vadd.f32 %v118, %v186
    %v188 = vpop.f32.mrb[0].mxu0
    %v189 = vpop.f32.mrb[0].mxu0
    %v190 = vadd.f32 %v123, %v189
    %v191 = vpop.f32.mrb[0].mxu0
    %192 = vmatprep.mubr.bf16.mxu0 0
    %193 = vmatmul.mubr.bf16.gmra.mrb[0].mxu0 %v150
    %v194 = vpop.f32.mrb[0].mxu0
    %v195 = vadd.f32 %v128, %v194
    %v196 = vpop.f32.mrb[0].mxu0
    %v197 = vpop.f32.mrb[0].mxu0
    %v198 = vadd.f32 %v133, %v197
    %v199 = vpop.f32.mrb[0].mxu0
    %200 = vdwg.mxu0
    %v201 = vmax.f32 %v187, 0.0
    %v202 = vmax.f32 %v190, 0.0
    %v203 = vmax.f32 %v195, 0.0
    %v204 = vmax.f32 %v198, 0.0
    %v205 = vld [vmem:[%s5] sm:$0xf]
    %v206 = vld [vmem:[%s5 + $0x4] sm:$0xf]
    %v207 = vpack.c.bf16 %v202, %v201
    %v208 = vpack.c.bf16 %v204, %v203
    %v209 = vld [vmem:[%s6] sm:$0xff]
    %v210 = vld [vmem:[%s6 + $0x8] sm:$0xff]
    %212 = vset.pattern.permute.xlu0 0
    %213 = vperm.xlu0 %212, %v209
    %v214 = vpop.permute.xlu0 %213
    %217 = vset.pattern.permute.xlu0 0
    %218 = vperm.xlu0 %217, %v210
    %v219 = vpop.permute.xlu0 %218
    %v223 = vunpack.c.l.b16 %v205
    %v224 = vunpack.c.l.b16 %v206
    %v225 = vpack.c.b16 %v224, %v223
    %vm226 = vcmask 261120
    %v228 = vsel %vm226, %v225, 0
    %230 = vmatprep.subr.bf16.mxu0 0
    %231 = vmatpush1.bf16.msra.mxu0 %v207
    %232 = vmatprep.subr.bf16.mxu0 0
    %233 = vmatpush1.bf16.msra.mxu0 %v208
    %234 = vmatprep.subr.bf16.mxu0 0
    %235 = vmatpush1.bf16.msra.mxu0 0
    %236 = vmatprep.subr.bf16.mxu0 0
    %237 = vmatpush1.bf16.msra.mxu0 0
    %238 = vmatprep.subr.bf16.mxu0 0
    %239 = vmatpush1.bf16.msra.mxu0 0
    %240 = vmatprep.subr.bf16.mxu0 0
    %241 = vmatpush1.bf16.msra.mxu0 0
    %242 = vmatprep.subr.bf16.mxu0 0
    %243 = vmatpush1.bf16.msra.mxu0 0
    %244 = vmatprep.subr.bf16.mxu0 0
    %245 = vmatpush1.bf16.msra.mxu0 0
    %246 = vmatprep.subr.bf16.mxu0 0
    %247 = vmatpush1.bf16.msra.mxu0 0
    %248 = vmatprep.subr.bf16.mxu0 0
    %249 = vmatpush1.bf16.msra.mxu0 0
    %250 = vmatprep.subr.bf16.mxu0 0
    %251 = vmatpush1.bf16.msra.mxu0 0
    %252 = vmatprep.subr.bf16.mxu0 0
    %253 = vmatpush1.bf16.msra.mxu0 0
    %254 = vmatprep.subr.bf16.mxu0 0
    %255 = vmatpush1.bf16.msra.mxu0 0
    %256 = vmatprep.subr.bf16.mxu0 0
    %257 = vmatpush1.bf16.msra.mxu0 0
    %258 = vmatprep.subr.bf16.mxu0 0
    %259 = vmatpush1.bf16.msra.mxu0 0
    %260 = vmatprep.subr.bf16.mxu0 0
    %261 = vmatpush1.bf16.msra.mxu0 0
    %262 = vmatprep.mubr.bf16.mxu0 0
    %263 = vmatmul.mubr.bf16.gmra.mrb[0].mxu0 %v228
    %v264 = vpop.f32.mrb[0].mxu0
    %v265 = vadd.f32 %v214, %v264
    %v266 = vpop.f32.mrb[0].mxu0
    %v267 = vpop.f32.mrb[0].mxu0
    %v268 = vadd.f32 %v219, %v267
    %v269 = vpop.f32.mrb[0].mxu0
    %270 = vdwg.mxu0
    %v271 = vmax.f32 %v265, 0.0
    %v272 = vmax.f32 %v268, 0.0
    %v273 = vld [vmem:[%s7] sm:$0x3]
    %v274 = vpack.c.bf16 %v272, %v271
    %v275 = vld [vmem:[%s8] sm:$0xf]
    %277 = vset.pattern.permute.xlu0 0
    %278 = vperm.xlu0 %277, %v275
    %v279 = vpop.permute.xlu0 %278
    %v282 = vsel %vm145, %v273, 0
    %284 = vmatprep.subr.bf16.mxu0 0
    %285 = vmatpush1.bf16.msra.mxu0 %v274
    %286 = vmatprep.subr.bf16.mxu0 0
    %287 = vmatpush1.bf16.msra.mxu0 0
    %288 = vmatprep.subr.bf16.mxu0 0
    %289 = vmatpush1.bf16.msra.mxu0 0
    %290 = vmatprep.subr.bf16.mxu0 0
    %291 = vmatpush1.bf16.msra.mxu0 0
    %292 = vmatprep.subr.bf16.mxu0 0
    %293 = vmatpush1.bf16.msra.mxu0 0
    %294 = vmatprep.subr.bf16.mxu0 0
    %295 = vmatpush1.bf16.msra.mxu0 0
    %296 = vmatprep.subr.bf16.mxu0 0
    %297 = vmatpush1.bf16.msra.mxu0 0
    %298 = vmatprep.subr.bf16.mxu0 0
    %299 = vmatpush1.bf16.msra.mxu0 0
    %300 = vmatprep.subr.bf16.mxu0 0
    %301 = vmatpush1.bf16.msra.mxu0 0
    %302 = vmatprep.subr.bf16.mxu0 0
    %303 = vmatpush1.bf16.msra.mxu0 0
    %304 = vmatprep.subr.bf16.mxu0 0
    %305 = vmatpush1.bf16.msra.mxu0 0
    %306 = vmatprep.subr.bf16.mxu0 0
    %307 = vmatpush1.bf16.msra.mxu0 0
    %308 = vmatprep.subr.bf16.mxu0 0
    %309 = vmatpush1.bf16.msra.mxu0 0
    %310 = vmatprep.subr.bf16.mxu0 0
    %311 = vmatpush1.bf16.msra.mxu0 0
    %312 = vmatprep.subr.bf16.mxu0 0
    %313 = vmatpush1.bf16.msra.mxu0 0
    %314 = vmatprep.subr.bf16.mxu0 0
    %315 = vmatpush1.bf16.msra.mxu0 0
    %316 = vmatprep.mubr.bf16.mxu0 0
    %317 = vmatmul.mubr.bf16.gmra.mrb[0].mxu0 %v282
    %v318 = vpop.f32.mrb[0].mxu0
    %v319 = vadd.f32 %v279, %v318
    %v320 = vpop.f32.mrb[0].mxu0
    %v321 = vpop.f32.mrb[0].mxu0
    %v322 = vpop.f32.mrb[0].mxu0
    %323 = vdwg.mxu0
    %vm324 = vcmask 125952
    %v325 = vsel %vm324, %v319, -inf
    %v326 = vrot.slane %v325, 4
    %v327 = vmax.f32 %v325, %v326
    %v328 = vrot.slane %v327, 2
    %v329 = vmax.f32 %v327, %v328
    %v330 = vrot.slane %v329, 1
    %v331 = vmax.f32 %v329, %v330
    %v332 = vsub.f32 %v319, %v331
    %v333 = vmul.f32 %v332, 1.442695
    %v334 = vpow.pop %v333
    %v335 = vsel %vm324, %v334, 0.0
    %v336 = vrot.slane %v335, 4
    %v337 = vadd.f32 %v335, %v336
    %v338 = vrot.slane %v337, 2
    %v339 = vadd.f32 %v337, %v338
    %v340 = vrot.slane %v339, 1
    %v341 = vadd.f32 %v339, %v340
    %v342 = vrcp.pop %v341
    %v343 = vmul.f32 %v334, %v342
    %344 = vst.msk [vmem:[#allocation2] sm:$0xf] %vm324, %v343
    // Predicated region
    $region38: #{qcnet_forward.1} parent=1 // pred_check
      _
    $region39: #{qcnet_forward.1} parent=1 // pred_check_branch
      %346 = sbr.rel (0) target = $region41
    $region40: #{qcnet_forward.1} parent=1 // pred_region
      %s348 = ssub.s32 64, 64
      %349 = vsyncadd [#allocation3], %s348
      %s351 = sshll.u32 [#allocation2], 4
      %s352 = int_to_ptr.vmem [resolvable:$true] %s351
      %354 = dma.vmem_to_hbm [thread:$0]  %s352, 64, %s9, [#allocation3]
    $region41: #{qcnet_forward.1} parent=1 // pred_fallthru
      _
    // Predicated region
    $region42: #{qcnet_forward.1} parent=1 // pred_check
      _
    $region43: #{qcnet_forward.1} parent=1 // pred_check_branch
      %356 = sbr.rel (0) target = $region45
    $region44: #{qcnet_forward.1} parent=1 // pred_region
      %357 = dma.done [#allocation3], 64
    $region45: #{qcnet_forward.1} parent=1 // pred_fallthru
      _
    %358 = vsyncpa [#allocation3], 1

</llo_original>
